<compile_context>
chip_gen: v5e
topology: v5e:2x2
jax: 0.10.0
libtpu: 0.0.40
codegen_flags: <defaults>
</compile_context>

<pallas_src>
import functools

import jax
import jax.numpy as jnp
from jax.experimental import pallas as pl
from jax.experimental.pallas import tpu as pltpu


_BLOCK_TARGET_BYTES = 16 << 20   # aim for 8-16 MiB per-step DMA blocks
_MIN_GRID_STEPS = 4              # keep the software pipeline busy


# ---------------------------------------------------------------------------
# Shared row-assembly helpers (used by both the single-pass and L-tiled paths)
# ---------------------------------------------------------------------------

def _write_cat(o_ref, x, mean_x, h0, h1, *, D, H0, H1, aligned):
    """Write cat([x, mean_x, h0, h1], -1) into o_ref."""
    TB, TL, _ = x.shape
    dt = o_ref.dtype
    if aligned:
        # Every segment starts at a 128-aligned lane offset -> dense slab stores.
        o_ref[:, :, 0:D] = x.astype(dt)
        o_ref[:, :, D:2 * D] = jnp.broadcast_to(mean_x.astype(dt), (TB, TL, D))
        o_ref[:, :, 2 * D:2 * D + H0] = jnp.broadcast_to(h0.astype(dt), (TB, TL, H0))
        o_ref[:, :, 2 * D + H0:] = jnp.broadcast_to(h1.astype(dt), (TB, TL, H1))
    else:
        # Unaligned offsets would lower to masked stores + lane rotates per
        # segment; assemble the row in-register and do ONE full-width store.
        row = jnp.concatenate(
            [x.astype(dt),
             jnp.broadcast_to(mean_x.astype(dt), (TB, TL, D)),
             jnp.broadcast_to(h0.astype(dt), (TB, TL, H0)),
             jnp.broadcast_to(h1.astype(dt), (TB, TL, H1))],
            axis=-1)
        o_ref[...] = row


def _addmul_rows(x, mean_x, h0, h1, *, mul, out_dtype):
    """'add':  x + mean_x + hidden_cat ; 'mul':  x * mean_x * hidden_cat."""
    xf = x.astype(jnp.float32)
    mf = mean_x.astype(jnp.float32)
    hcat = jnp.concatenate([h0, h1], axis=-1).astype(jnp.float32)  # (TB, 1, D)
    out = xf * mf * hcat if mul else xf + mf + hcat
    return out.astype(out_dtype)


# ---------------------------------------------------------------------------
# Single-pass kernels (whole L per block; mean computed in-kernel)
# ---------------------------------------------------------------------------

def _fusion_cat_kernel(x_ref, h0_ref, h1_ref, o_ref, *, TB, D, H0, H1, aligned):
    # x_ref: (TB, L, D) block.  h0_ref/h1_ref: full (B, 1, H*) arrays that stay
    # VMEM-resident across the grid (constant index_map); slice our TB rows.
    b0 = pl.multiple_of(pl.program_id(0) * TB, TB)
    x = x_ref[...]
    mean_x = jnp.mean(x.astype(jnp.float32), axis=1, keepdims=True)   # f32 accum
    h0 = h0_ref[pl.ds(b0, TB), :, :]
    h1 = h1_ref[pl.ds(b0, TB), :, :]
    _write_cat(o_ref, x, mean_x, h0, h1, D=D, H0=H0, H1=H1, aligned=aligned)


def _fusion_addmul_kernel(x_ref, h0_ref, h1_ref, o_ref, *, TB, mul):
    b0 = pl.multiple_of(pl.program_id(0) * TB, TB)
    x = x_ref[...]
    mean_x = jnp.mean(x.astype(jnp.float32), axis=1, keepdims=True)
    h0 = h0_ref[pl.ds(b0, TB), :, :]
    h1 = h1_ref[pl.ds(b0, TB), :, :]
    o_ref[...] = _addmul_rows(x, mean_x, h0, h1, mul=mul, out_dtype=o_ref.dtype)


# ---------------------------------------------------------------------------
# L-tiled two-pass fallback (long sequences): mean kernel + emit kernel
# ---------------------------------------------------------------------------

def _mean_over_len_kernel(x_ref, m_ref, *, L, TL):
    # grid = (B, nl); l is the (last, 'arbitrary') reduction axis.  The output
    # block (1,1,D) keeps the same index across l, so it acts as the f32
    # accumulator (P3).  Padded rows of a ragged final tile are masked out.
    li = pl.program_id(1)

    @pl.when(li == 0)
    def _():
        m_ref[...] = jnp.zeros_like(m_ref)

    x = x_ref[...].astype(jnp.float32)                      # (1, TL, D)
    row = jax.lax.broadcasted_iota(jnp.int32, x.shape, 1) + li * TL
    x = jnp.where(row < L, x, 0.0)
    m_ref[...] += jnp.sum(x, axis=1, keepdims=True)

    @pl.when(li == pl.num_programs(1) - 1)
    def _():
        m_ref[...] *= (1.0 / L)


def _emit_cat_kernel(x_ref, m_ref, h0_ref, h1_ref, o_ref, *, D, H0, H1, aligned):
    _write_cat(o_ref, x_ref[...], m_ref[...], h0_ref[...], h1_ref[...],
               D=D, H0=H0, H1=H1, aligned=aligned)


def _emit_addmul_kernel(x_ref, m_ref, h0_ref, h1_ref, o_ref, *, mul):
    o_ref[...] = _addmul_rows(x_ref[...], m_ref[...], h0_ref[...], h1_ref[...],
                              mul=mul, out_dtype=o_ref.dtype)


# ---------------------------------------------------------------------------
# Tiling / VMEM sizing helpers
# ---------------------------------------------------------------------------

def _physical_vmem_bytes():
    try:
        info = pltpu.get_tpu_info()
        cap = getattr(info, "vmem_capacity_bytes", None)
        if cap:
            return int(cap)
    except Exception:
        pass
    return 64 << 20   # conservative default (v7x per-core VMEM)


def _pick_batch_tile(B, cap):
    """Largest divisor of B that is <= cap, keeps >= _MIN_GRID_STEPS grid steps
    when B allows it, and prefers an even step count (v7x: 2 TensorCores).
    Ragged batch tiles would also be correct (the j-mean is per batch row) but
    full blocks keep every DMA dense."""
    cap = max(1, min(int(cap), B))
    if B >= _MIN_GRID_STEPS:
        cap = min(cap, B // _MIN_GRID_STEPS)
    tb = cap
    while B % tb:
        tb -= 1
    if tb > 1 and (B // tb) % 2:
        t = tb - 1
        while t >= 1 and (B % t or (B // t) % 2):
            t -= 1
        if t >= 1:
            tb = t
    return tb


def _pick_len_tile(L, per_row_vmem, per_row_hbm, budget):
    """Length tile for the fallback path: multiple of 8, prefers a divisor of L
    (otherwise the final tile is ragged and the mean kernel masks it)."""
    cap = max(1, budget // max(per_row_vmem, 1))
    cap = min(cap, max(1, _BLOCK_TARGET_BYTES // max(per_row_hbm, 1)))
    cap = min(cap, L)
    if L <= 8 or cap >= L:
        return L
    tl = max(8, (cap // 8) * 8)
    t = tl
    while t >= 8:
        if L % t == 0:
            return t
        t -= 8
    return tl


# ---------------------------------------------------------------------------
# Public wrapper
# ---------------------------------------------------------------------------

def fusion_network(hidden0, hidden1, x, fuse_method="cat", vmem_budget_bytes=None):
    """hidden0: [B, H0], hidden1: [B, H1], x: [B, L, D] -> fused."""
    B, L, D = x.shape
    H0 = hidden0.shape[-1]
    H1 = hidden1.shape[-1]
    h0 = hidden0.reshape(B, 1, H0)
    h1 = hidden1.reshape(B, 1, H1)
    itemsize = jnp.dtype(x.dtype).itemsize

    fuse_method = fuse_method.lower()
    if "cat" in fuse_method:
        out_dim = 2 * D + H0 + H1
        mode = "cat"
    elif "add" in fuse_method:
        assert H0 + H1 == D, "'add' fuse requires dim(input) == dim(hidden_cat)"
        out_dim = D
        mode = "add"
    elif "mul" in fuse_method:
        assert H0 + H1 == D, "'mul' fuse requires dim(input) == dim(hidden_cat)"
        out_dim = D
        mode = "mul"
    else:
        raise ValueError(fuse_method)

    # All cat-segment lane offsets (0, D, 2D, 2D+H0) 128-aligned?
    aligned = (D % 128 == 0) and (H0 % 128 == 0)

    # VMEM sizing: ~0.75x physical as the compiler limit (48 MiB on v7x,
    # 96 MiB on v5e/v6e), and 0.85x of that as our own tiling budget.
    phys = _physical_vmem_bytes()
    vmem_limit = int(phys * 0.75)
    budget = vmem_budget_bytes if vmem_budget_bytes is not None else int(vmem_limit * 0.85)
    params = dict(vmem_limit_bytes=vmem_limit)

    # Per-batch-row footprint of the single-pass path: double-buffered in+out
    # blocks plus ~one f32 copy for the in-kernel temporaries.
    per_batch_vmem = L * (D + out_dim) * (2 * itemsize + 4)
    per_batch_hbm = L * (D + out_dim) * itemsize
    resident = 2 * B * (H0 + H1) * itemsize   # VMEM-resident hidden (x2 buffers)

    if per_batch_vmem + resident <= budget:
        # ------------------ single-pass path ------------------
        cap_tb = (budget - resident) // per_batch_vmem
        cap_tb = min(cap_tb, max(1, _BLOCK_TARGET_BYTES // max(per_batch_hbm, 1)))
        TB = _pick_batch_tile(B, cap_tb)

        if mode == "cat":
            kernel = functools.partial(_fusion_cat_kernel, TB=TB, D=D, H0=H0,
                                       H1=H1, aligned=aligned)
        else:
            kernel = functools.partial(_fusion_addmul_kernel, TB=TB,
                                       mul=(mode == "mul"))

        return pl.pallas_call(
            kernel,
            out_shape=jax.ShapeDtypeStruct((B, L, out_dim), x.dtype),
            grid=(B // TB,),
            in_specs=[
                pl.BlockSpec((TB, L, D), lambda b: (b, 0, 0)),
                # hidden stays VMEM-resident across the grid (constant index map)
                pl.BlockSpec((B, 1, H0), lambda b: (0, 0, 0)),
                pl.BlockSpec((B, 1, H1), lambda b: (0, 0, 0)),
            ],
            out_specs=pl.BlockSpec((TB, L, out_dim), lambda b: (b, 0, 0)),
            compiler_params=pltpu.CompilerParams(
                dimension_semantics=("parallel",), **params),
        )(x, h0, h1)

    # ------------------ L-tiled two-pass fallback ------------------
    per_row_vmem = (D + out_dim) * (2 * itemsize + 4)
    per_row_hbm = (D + out_dim) * itemsize
    TL = _pick_len_tile(L, per_row_vmem, per_row_hbm, budget)
    nl = pl.cdiv(L, TL)

    # Pass 1: f32 mean over the length axis.
    mean_x = pl.pallas_call(
        functools.partial(_mean_over_len_kernel, L=L, TL=TL),
        out_shape=jax.ShapeDtypeStruct((B, 1, D), jnp.float32),
        grid=(B, nl),
        in_specs=[pl.BlockSpec((1, TL, D), lambda b, l: (b, l, 0))],
        out_specs=pl.BlockSpec((1, 1, D), lambda b, l: (b, 0, 0)),
        compiler_params=pltpu.CompilerParams(
            dimension_semantics=("parallel", "arbitrary"), **params),
    )(x)

    # Pass 2: stream L tiles and emit the fused rows.
    if mode == "cat":
        emit = functools.partial(_emit_cat_kernel, D=D, H0=H0, H1=H1,
                                 aligned=aligned)
    else:
        emit = functools.partial(_emit_addmul_kernel, mul=(mode == "mul"))

    return pl.pallas_call(
        emit,
        out_shape=jax.ShapeDtypeStruct((B, L, out_dim), x.dtype),
        grid=(B, nl),
        in_specs=[
            pl.BlockSpec((1, TL, D), lambda b, l: (b, l, 0)),
            pl.BlockSpec((1, 1, D), lambda b, l: (b, 0, 0)),
            pl.BlockSpec((1, 1, H0), lambda b, l: (b, 0, 0)),
            pl.BlockSpec((1, 1, H1), lambda b, l: (b, 0, 0)),
        ],
        out_specs=pl.BlockSpec((1, TL, out_dim), lambda b, l: (b, l, 0)),
        compiler_params=pltpu.CompilerParams(
            dimension_semantics=("parallel", "parallel"), **params),
    )(x, mean_x, h0, h1)


# ---------------------------------------------------------------------------
# Pure-JAX reference (materializes the L x L tensor, like the PyTorch module)
# ---------------------------------------------------------------------------

def _reference(hidden0, hidden1, x, fuse_method="cat"):
    B, L, D = x.shape
    hidden_cat = jnp.concatenate([hidden0, hidden1], axis=-1)
    a_ext = jnp.broadcast_to(x[:, :, None, :], (B, L, L, D))
    b_ext = jnp.broadcast_to(x[:, None, :, :], (B, L, L, D))
    h_ext = jnp.broadcast_to(hidden_cat[:, None, None, :],
                             (B, L, L, hidden_cat.shape[-1]))
    if "cat" in fuse_method:
        return jnp.concatenate([a_ext, b_ext, h_ext], axis=-1).mean(axis=2)
    if "add" in fuse_method:
        return (a_ext + b_ext + h_ext).mean(axis=2)
    return (a_ext * b_ext * h_ext).mean(axis=2)


if __name__ == "__main__":
    keys = jax.random.split(jax.random.PRNGKey(0), 4)

    def make(B, L, D, H, k):
        k0, k1, k2 = jax.random.split(k, 3)
        hidden0 = jax.random.normal(k0, (B, H), dtype=jnp.float32)
        hidden1 = jax.random.normal(k1, (B, H), dtype=jnp.float32)
        xx = jax.random.normal(k2, (B, L, D), dtype=jnp.float32)
        return hidden0, hidden1, xx

    # 1) Single-pass path, unaligned lane layout (in-register row + one store).
    h0, h1, x = make(2, 8, 32, 16, keys[0])
    for method in ("cat", "add", "mul"):
        out = fusion_network(h0, h1, x, fuse_method=method)
        jax.block_until_ready(out)
        ref = _reference(h0, h1, x, fuse_method=method)
        assert out.shape == ref.shape, (method, out.shape, ref.shape)
        assert jnp.allclose(out, ref, atol=1e-5, rtol=1e-5), f"{method} (single-pass) mismatch"

    # 2) Single-pass path with 128-aligned segments (lane-dense slab stores).
    h0a, h1a, xa = make(2, 8, 128, 128, keys[1])
    out = fusion_network(h0a, h1a, xa, fuse_method="cat")
    jax.block_until_ready(out)
    refa = _reference(h0a, h1a, xa, fuse_method="cat")
    assert jnp.allclose(out, refa, atol=1e-5, rtol=1e-5), "cat (aligned) mismatch"

    # 3) L-tiled two-pass fallback (forced via a tiny tiling budget), L % TL == 0.
    h0b, h1b, xb = make(2, 64, 32, 16, keys[2])
    for method in ("cat", "add", "mul"):
        out = fusion_network(h0b, h1b, xb, fuse_method=method,
                             vmem_budget_bytes=32 * 1024)
        jax.block_until_ready(out)
        ref = _reference(h0b, h1b, xb, fuse_method=method)
        assert jnp.allclose(out, ref, atol=1e-5, rtol=1e-5), f"{method} (L-tiled) mismatch"

    # 4) L-tiled fallback with a ragged final L tile (masked j-mean).
    h0c, h1c, xc = make(2, 44, 32, 16, keys[3])
    out = fusion_network(h0c, h1c, xc, fuse_method="cat", vmem_budget_bytes=32 * 1024)
    jax.block_until_ready(out)
    refc = _reference(h0c, h1c, xc, fuse_method="cat")
    assert jnp.allclose(out, refc, atol=1e-5, rtol=1e-5), "cat (ragged L-tiled) mismatch"

    print("KERNEL_OK")
</pallas_src>

<mosaic_0001>
module attributes {stable_mosaic.version = 11 : i64} {
  func.func @_fusion_cat_kernel(%arg0: i32, %arg1: memref<1x8x32xf32, #tpu.memory_space<vmem>>, %arg2: memref<2x1x16xf32, #tpu.memory_space<vmem>>, %arg3: memref<2x1x16xf32, #tpu.memory_space<vmem>>, %arg4: memref<1x8x96xf32, #tpu.memory_space<vmem>>) attributes {dimension_semantics = [#tpu.dimension_semantics<parallel>], iteration_bounds = array<i64: 2>, scalar_prefetch = 0 : i64, scratch_operands = 0 : i64, tpu.core_type = #tpu.core_type<tc>, window_params = [{transform_indices = @transform_0, window_bounds = array<i64: 1, 8, 32>}, {pipeline_mode = #tpu.pipeline_mode<synchronous>, transform_indices = @transform_1, window_bounds = array<i64: 2, 1, 16>}, {pipeline_mode = #tpu.pipeline_mode<synchronous>, transform_indices = @transform_2, window_bounds = array<i64: 2, 1, 16>}, {transform_indices = @transform_3, window_bounds = array<i64: 1, 8, 96>}]} {
    %c1_i32 = arith.constant 1 : i32
    %0 = arith.muli %arg0, %c1_i32 : i32
    %1 = tpu.assume_multiple %0, 1 : i32
    %c0 = arith.constant 0 : index
    %c0_0 = arith.constant 0 : index
    %c0_1 = arith.constant 0 : index
    %2 = vector.load %arg1[%c0, %c0_0, %c0_1] : memref<1x8x32xf32, #tpu.memory_space<vmem>>, vector<1x8x32xf32>
    %cst = arith.constant dense<0.000000e+00> : vector<1x32xf32>
    %3 = vector.multi_reduction <add>, %2, %cst [1] : vector<1x8x32xf32> to vector<1x32xf32>
    %4 = vector.shape_cast %3 : vector<1x32xf32> to vector<1x1x32xf32>
    %cst_2 = arith.constant 8.000000e+00 : f32
    %5 = vector.broadcast %cst_2 : f32 to vector<1x1x32xf32>
    %6 = arith.divf %4, %5 : vector<1x1x32xf32>
    %7 = arith.index_cast %1 : i32 to index
    %c0_3 = arith.constant 0 : index
    %c0_4 = arith.constant 0 : index
    %8 = vector.load %arg2[%7, %c0_3, %c0_4] : memref<2x1x16xf32, #tpu.memory_space<vmem>>, vector<1x1x16xf32>
    %9 = arith.index_cast %1 : i32 to index
    %c0_5 = arith.constant 0 : index
    %c0_6 = arith.constant 0 : index
    %10 = vector.load %arg3[%9, %c0_5, %c0_6] : memref<2x1x16xf32, #tpu.memory_space<vmem>>, vector<1x1x16xf32>
    %11 = vector.shape_cast %6 : vector<1x1x32xf32> to vector<1x1x32xf32>
    %12 = vector.broadcast %11 : vector<1x1x32xf32> to vector<1x8x32xf32>
    %13 = vector.shape_cast %8 : vector<1x1x16xf32> to vector<1x1x16xf32>
    %14 = vector.broadcast %13 : vector<1x1x16xf32> to vector<1x8x16xf32>
    %15 = vector.shape_cast %10 : vector<1x1x16xf32> to vector<1x1x16xf32>
    %16 = vector.broadcast %15 : vector<1x1x16xf32> to vector<1x8x16xf32>
    %17 = tpu.concatenate %2, %12, %14, %16 in 2 : vector<1x8x32xf32>, vector<1x8x32xf32>, vector<1x8x16xf32>, vector<1x8x16xf32> -> vector<1x8x96xf32>
    %c0_7 = arith.constant 0 : index
    %c0_8 = arith.constant 0 : index
    %c0_9 = arith.constant 0 : index
    %18 = vector.load %arg4[%c0_7, %c0_8, %c0_9] : memref<1x8x96xf32, #tpu.memory_space<vmem>>, vector<1x8x96xf32>
    tpu.vector_store %arg4[%c0_7, %c0_8, %c0_9], %17 {strides = array<i32>} : memref<1x8x96xf32, #tpu.memory_space<vmem>>, vector<1x8x96xf32>,
    return
  }
  func.func @transform_0(%arg0: i32) -> (i32, i32, i32) {
    %c0_i32 = arith.constant 0 : i32
    %c0_i32_0 = arith.constant 0 : i32
    %c0_i32_1 = arith.constant 0 : i32
    return %arg0, %c0_i32, %c0_i32_0 : i32, i32, i32
  }
  func.func @transform_1(%arg0: i32) -> (i32, i32, i32) {
    %c0_i32 = arith.constant 0 : i32
    %c0_i32_0 = arith.constant 0 : i32
    %c0_i32_1 = arith.constant 0 : i32
    %c0_i32_2 = arith.constant 0 : i32
    return %c0_i32, %c0_i32_0, %c0_i32_1 : i32, i32, i32
  }
  func.func @transform_2(%arg0: i32) -> (i32, i32, i32) {
    %c0_i32 = arith.constant 0 : i32
    %c0_i32_0 = arith.constant 0 : i32
    %c0_i32_1 = arith.constant 0 : i32
    %c0_i32_2 = arith.constant 0 : i32
    return %c0_i32, %c0_i32_0, %c0_i32_1 : i32, i32, i32
  }
  func.func @transform_3(%arg0: i32) -> (i32, i32, i32) {
    %c0_i32 = arith.constant 0 : i32
    %c0_i32_0 = arith.constant 0 : i32
    %c0_i32_1 = arith.constant 0 : i32
    return %arg0, %c0_i32, %c0_i32_0 : i32, i32, i32
  }
}

</mosaic_0001>

<llo_original>
// kernel: tpu_custom_call.1
$region0: #{tpu_custom_call.1}
  #allocation0 [shape = 'u32[]', space=smem, size = 0x4, offset = 0x4, fixed_abs, tag = 'smem constant byte address 0x4 - core index']
  #allocation1 [shape = 'u32[72,128]{1,0:T(1,128)}', space=vmem, size = 0x9000, scoped, tag = 'internal scratch']
  %s0 = inlined_call_operand.hbm [shape: f32[2,8,32], index: 0, kind: input, shape index: {}]
  %s1 = inlined_call_operand.hbm [shape: f32[2,1,16], index: 1, kind: input, shape index: {}]
  %s2 = inlined_call_operand.hbm [shape: f32[2,1,16], index: 2, kind: input, shape index: {}]
  %s3 = inlined_call_operand.hbm [shape: f32[2,8,96], index: 3, kind: output, shape index: {}]
  %s4 = sld [smem:[#allocation0]]
  $region57: #{tpu_custom_call.1} parent=0
    _
  %s6 = ssub.s32 1, %s4
  %s7 = scalar_select 0, %s6, %s4
  $region1: #{tpu_custom_call.1} parent=0
    #allocation2 [shape = 'u8[8192]{0}', space=vmem, size = 0x2000, scoped, tag = 'input window, operand 0']
    #allocation3 [shape = 's32[2]{0}', space=sflag, size = 0x8, scoped, tag = 'scoped memory for tpu_custom_call.1']
    #allocation4 [shape = 's32[2]{0}', space=sflag, size = 0x8, scoped, tag = 'scoped memory for tpu_custom_call.1']
    #allocation5 [shape = 'u8[1024]{0}', space=vmem, size = 0x400, scoped, tag = 'input window, operand 1, single buffered']
    #allocation6 [shape = 's32[1]{0}', space=sflag, size = 0x4, scoped, tag = 'scoped memory for tpu_custom_call.1']
    #allocation7 [shape = 'u8[1024]{0}', space=vmem, size = 0x400, scoped, tag = 'input window, operand 2, single buffered']
    #allocation8 [shape = 'u8[8192]{0}', space=vmem, size = 0x2000, scoped, tag = 'output window, operand 0']
    %8 = vsyncpa [#allocation3], 0
    %s9 = scalar_lea.sflag [#allocation3], 1
    %10 = vsyncpa %s9, 0
    %11 = vsyncpa [#allocation6], 0
    %12 = vsyncpa [#allocation4], 0
    %s13 = scalar_lea.sflag [#allocation4], 1
    %14 = vsyncpa %s13, 0
    loop: start=0, step=1, limit=4
    $region2: #{tpu_custom_call.1} parent=1 // loop_pre_header
      _
    $region3: #{tpu_custom_call.1} parent=1 // loop_header
      %s16 = sphi 0, %s20
      %p17 = scmp.ge.s32.totalorder %s16, 4
      %s26 = sphi 0, %s28
      %s29 = sphi 0, %s26
      %s30 = sphi 0, %s29
      %s46 = sphi 0, %s30
      %s50 = sphi 0, %s50
      %s52 = sphi 0, %s50
      %s53 = sphi 0, %s52
      %s67 = sphi 0, %s53
      %s71 = sphi 0, %s71
      %s73 = sphi 0, %s71
      %s74 = sphi 0, %s73
      %s88 = sphi 0, %s74
      %s94 = sphi 0, %s96
      %s97 = sphi 0, %s94
      %s98 = sphi 0, %s97
      %s114 = sphi 0, %s98
    $region4: #{tpu_custom_call.1} parent=1 // loop_header_branch
      %19 = sbr.rel (%p17) target = $region8
    $region5: #{tpu_custom_call.1} parent=1 // loop_body
      %s21 = ssub.s32 %s16, 1
      %s22 = ssub.s32 %s16, 2
      %s23 = sadd.s32 %s16, 1
      %s24 = ssub.s32 %s16, %s23
      %p25 = scmp.eq.s32.totalorder %s24, 0
      %s27 = sadd.s32 %s26, 1
      %s28 = scalar_select %p25, %s26, %s27
      %p31 = pneg %p25
      %p32 = scmp.eq.s32.totalorder %s16, 1
      %p33 = por %p31, %p32
      %p34 = scmp.ne.s32.totalorder %s26, %s29
      %p35 = scmp.eq.s32.totalorder %s16, 0
      %p36 = por %p34, %p35
      %p37 = scmp.ne.s32.totalorder %s26, %s29
      %p38 = scmp.eq.s32.totalorder %s21, 1
      %p39 = por %p37, %p38
      %p40 = scmp.ne.s32.totalorder %s29, %s30
      %p41 = scmp.eq.s32.totalorder %s21, 0
      %p42 = por %p40, %p41
      %p43 = scmp.ne.s32.totalorder %s29, %s30
      %p44 = scmp.eq.s32.totalorder %s22, 1
      %p45 = por %p43, %p44
      %p47 = scmp.ne.s32.totalorder %s30, %s46
      %p48 = scmp.eq.s32.totalorder %s22, 0
      %p49 = por %p47, %p48
      %s51 = sadd.s32 %s50, 1
      %p54 = scmp.eq.s32.totalorder %s16, 1
      %p55 = scmp.ne.s32.totalorder %s50, %s52
      %p56 = scmp.eq.s32.totalorder %s16, 0
      %p57 = por %p55, %p56
      %p58 = scmp.ne.s32.totalorder %s50, %s52
      %p59 = scmp.eq.s32.totalorder %s21, 1
      %p60 = por %p58, %p59
      %p61 = scmp.ne.s32.totalorder %s52, %s53
      %p62 = scmp.eq.s32.totalorder %s21, 0
      %p63 = por %p61, %p62
      %p64 = scmp.ne.s32.totalorder %s52, %s53
      %p65 = scmp.eq.s32.totalorder %s22, 1
      %p66 = por %p64, %p65
      %p68 = scmp.ne.s32.totalorder %s53, %s67
      %p69 = scmp.eq.s32.totalorder %s22, 0
      %p70 = por %p68, %p69
      %s72 = sadd.s32 %s71, 1
      %p75 = scmp.eq.s32.totalorder %s16, 1
      %p76 = scmp.ne.s32.totalorder %s71, %s73
      %p77 = scmp.eq.s32.totalorder %s16, 0
      %p78 = por %p76, %p77
      %p79 = scmp.ne.s32.totalorder %s71, %s73
      %p80 = scmp.eq.s32.totalorder %s21, 1
      %p81 = por %p79, %p80
      %p82 = scmp.ne.s32.totalorder %s73, %s74
      %p83 = scmp.eq.s32.totalorder %s21, 0
      %p84 = por %p82, %p83
      %p85 = scmp.ne.s32.totalorder %s73, %s74
      %p86 = scmp.eq.s32.totalorder %s22, 1
      %p87 = por %p85, %p86
      %p89 = scmp.ne.s32.totalorder %s74, %s88
      %p90 = scmp.eq.s32.totalorder %s22, 0
      %p91 = por %p89, %p90
      %s92 = ssub.s32 %s16, %s23
      %p93 = scmp.eq.s32.totalorder %s92, 0
      %s95 = sadd.s32 %s94, 1
      %s96 = scalar_select %p93, %s94, %s95
      %p99 = pneg %p93
      %p100 = scmp.eq.s32.totalorder %s16, 1
      %p101 = por %p99, %p100
      %p102 = scmp.ne.s32.totalorder %s94, %s97
      %p103 = scmp.eq.s32.totalorder %s16, 0
      %p104 = por %p102, %p103
      %p105 = scmp.ne.s32.totalorder %s94, %s97
      %p106 = scmp.eq.s32.totalorder %s21, 1
      %p107 = por %p105, %p106
      %p108 = scmp.ne.s32.totalorder %s97, %s98
      %p109 = scmp.eq.s32.totalorder %s21, 0
      %p110 = por %p108, %p109
      %p111 = scmp.ne.s32.totalorder %s97, %s98
      %p112 = scmp.eq.s32.totalorder %s22, 1
      %p113 = por %p111, %p112
      %p115 = scmp.ne.s32.totalorder %s98, %s114
      %p116 = scmp.eq.s32.totalorder %s22, 0
      %p117 = por %p115, %p116
      %p118 = scmp.le.s32.totalorder 1, %s16
      %p119 = scmp.lt.s32.totalorder %s16, 3
      %p120 = pnand %p118, %p119
      %p121 = pneg %p120
      // Predicated region
      $region9: #{tpu_custom_call.1} parent=5 // pred_check
        _
      $region10: #{tpu_custom_call.1} parent=5 // pred_check_branch
        %123 = sbr.rel (%p120) target = $region12
      $region11: #{tpu_custom_call.1} parent=5 // pred_region
        %s124 = ssub.s32 %s16, 1
        // Predicated region
        $region13: #{tpu_custom_call.1} parent=11 // pred_check
          %p125 = pneg %p63
        $region14: #{tpu_custom_call.1} parent=11 // pred_check_branch
          %127 = sbr.rel (%p125) target = $region16
        $region15: #{tpu_custom_call.1} parent=11 // pred_region
          %129 = vsyncadd [#allocation6], 0
          %s130 = sshll.u32 %s1, 4
          %s131 = int_to_ptr.hbm [resolvable:$true] %s130
          %s132 = sshll.u32 [#allocation5], 4
          %s133 = int_to_ptr.vmem [resolvable:$true] %s132
          %138 = dma.hbm_to_vmem [thread:$0]  %s131, 32, %s133, [#allocation6], 16, 16, 1
        $region16: #{tpu_custom_call.1} parent=11 // pred_fallthru
          _
        // Predicated region
        $region17: #{tpu_custom_call.1} parent=11 // pred_check
          %p139 = pneg %p84
        $region18: #{tpu_custom_call.1} parent=11 // pred_check_branch
          %141 = sbr.rel (%p139) target = $region20
        $region19: #{tpu_custom_call.1} parent=11 // pred_region
          %143 = vsyncadd [#allocation6], 0
          %s144 = sshll.u32 %s2, 4
          %s145 = int_to_ptr.hbm [resolvable:$true] %s144
          %s146 = sshll.u32 [#allocation7], 4
          %s147 = int_to_ptr.vmem [resolvable:$true] %s146
          %152 = dma.hbm_to_vmem [thread:$0]  %s145, 32, %s147, [#allocation6], 16, 16, 1
        $region20: #{tpu_custom_call.1} parent=11 // pred_fallthru
          _
      $region12: #{tpu_custom_call.1} parent=5 // pred_fallthru
        _
      %p153 = scmp.lt.s32.totalorder %s16, 2
      // Predicated region
      $region21: #{tpu_custom_call.1} parent=5 // pred_check
        %p154 = pneg %p153
      $region22: #{tpu_custom_call.1} parent=5 // pred_check_branch
        %156 = sbr.rel (%p154) target = $region24
      $region23: #{tpu_custom_call.1} parent=5 // pred_region
        // Predicated region
        $region25: #{tpu_custom_call.1} parent=23 // pred_check
          %p157 = pneg %p36
        $region26: #{tpu_custom_call.1} parent=23 // pred_check_branch
          %159 = sbr.rel (%p157) target = $region28
        $region27: #{tpu_custom_call.1} parent=23 // pred_region
          %s160 = sand.u32 %s26, 1
          %s161 = scalar_lea.sflag [#allocation3], %s160
          %s162 = sand.u32 %s26, 1
          %s163 = smul.addr %s162, 8
          %s164 = scalar_lea.vmem [#allocation2], %s163
          %166 = vsyncadd %s161, 0
          %s167 = smul.addr %s16, 8
          %s168 = scalar_lea.hbm %s0, %s167
          %s170 = sshll.u32 %s168, 4
          %s171 = int_to_ptr.hbm [resolvable:$true] %s170
          %s172 = sshll.u32 %s164, 4
          %s173 = int_to_ptr.vmem [resolvable:$true] %s172
          %175 = dma.hbm_to_vmem [thread:$0]  %s171, 128, %s173, %s161
        $region28: #{tpu_custom_call.1} parent=23 // pred_fallthru
          _
      $region24: #{tpu_custom_call.1} parent=5 // pred_fallthru
        _
      %p176 = scmp.le.s32.totalorder 1, %s16
      %p177 = scmp.lt.s32.totalorder %s16, 3
      %p178 = pnand %p176, %p177
      %p179 = pneg %p178
      // Predicated region
      $region29: #{tpu_custom_call.1} parent=5 // pred_check
        _
      $region30: #{tpu_custom_call.1} parent=5 // pred_check_branch
        %181 = sbr.rel (%p178) target = $region32
      $region31: #{tpu_custom_call.1} parent=5 // pred_region
        %s182 = ssub.s32 %s16, 1
        %s183 = sand.u32 %s29, 1
        %s184 = scalar_lea.sflag [#allocation3], %s183
        %s185 = sand.u32 %s29, 1
        %s186 = smul.addr %s185, 8
        %s187 = scalar_lea.vmem [#allocation2], %s186
        // Predicated region
        $region33: #{tpu_custom_call.1} parent=31 // pred_check
          %p188 = pneg %p42
        $region34: #{tpu_custom_call.1} parent=31 // pred_check_branch
          %190 = sbr.rel (%p188) target = $region36
        $region35: #{tpu_custom_call.1} parent=31 // pred_region
          %192 = dma.done %s184, 128
        $region36: #{tpu_custom_call.1} parent=31 // pred_fallthru
          _
        // Predicated region
        $region37: #{tpu_custom_call.1} parent=31 // pred_check
          %p193 = pneg %p63
        $region38: #{tpu_custom_call.1} parent=31 // pred_check_branch
          %195 = sbr.rel (%p193) target = $region40
        $region39: #{tpu_custom_call.1} parent=31 // pred_region
          %197 = dma.done [#allocation6], 32
        $region40: #{tpu_custom_call.1} parent=31 // pred_fallthru
          _
        // Predicated region
        $region41: #{tpu_custom_call.1} parent=31 // pred_check
          %p198 = pneg %p84
        $region42: #{tpu_custom_call.1} parent=31 // pred_check_branch
          %200 = sbr.rel (%p198) target = $region44
        $region43: #{tpu_custom_call.1} parent=31 // pred_region
          %202 = dma.done [#allocation6], 32
        $region44: #{tpu_custom_call.1} parent=31 // pred_fallthru
          _
        %s203 = sand.u32 %s29, 1
        %s204 = scalar_lea.sflag [#allocation3], %s203
        %s205 = sand.u32 %s29, 1
        %s206 = smul.addr %s205, 8
        %s207 = scalar_lea.vmem [#allocation2], %s206
        %p208 = pneg %p42
        %p209 = pneg %p39
        %p210 = pneg %p63
        %p211 = pneg %p60
        %p212 = pneg %p84
        %p213 = pneg %p81
        %p214 = pneg %p110
        %p215 = pneg %p107
        %s216 = sand.u32 %s97, 1
        %s217 = scalar_lea.sflag [#allocation4], %s216
        %s218 = sand.u32 %s97, 1
        %s219 = smul.addr %s218, 8
        %s220 = scalar_lea.vmem [#allocation8], %s219
        %v221 = vld [vmem:[%s187] sm:$0xff]
        %vm222 = vcmask 261120
        %v223 = vsel %vm222, %v221, 0.0
        %v224 = vrot.slane %v223, 4
        %v225 = vadd.f32 %v223, %v224
        %v226 = vrot.slane %v225, 2
        %v227 = vadd.f32 %v225, %v226
        %v228 = vrot.slane %v227, 1
        %v229 = vadd.f32 %v227, %v228
        %v230 = vrcp.pop 8.0
        %v231 = vmul.f32 8.0, %v230
        %v232 = vsub.f32 1.0, %v231
        %v233 = vmul.f32 %v230, %v232
        %v234 = vadd.f32 %v230, %v233
        %vm235 = vweird.f32 %v230
        %v236 = vsel %vm235, %v230, %v234
        %v237 = vmul.f32 %v229, %v236
        %s238 = scalar_lea.vmem [#allocation5], %s21
        %v239 = vld [vmem:[%s238] sm:$0x1]
        %s240 = scalar_lea.vmem [#allocation7], %s21
        %v241 = vld [vmem:[%s240] sm:$0x1]
        %v243 = vperm.slane %v239, 0
        %v245 = vperm.slane %v241, 0
        %247 = vrot.lane.b32.xlu0 %v237, 32
        %v248 = vpop.permute.xlu0 %247
        %250 = vrot.lane.b32.xlu0 %v243, 64
        %v251 = vpop.permute.xlu0 %250
        %253 = vrot.lane.b32.xlu0 %v245, 80
        %v254 = vpop.permute.xlu0 %253
        %v256 = vsel %vm222, %v221, %v248
        %vm257 = vcmask 523264
        %v258 = vsel %vm257, %v256, %v251
        %vm259 = vcmask 654336
        %v260 = vsel %vm259, %v258, %v254
        %vm261 = vcmask 785408
        %262 = vst.msk [vmem:[%s220] sm:$0xff] %vm261, %v260
        %s263 = sand.u32 %s97, 1
        %s264 = scalar_lea.sflag [#allocation4], %s263
        %s265 = sand.u32 %s97, 1
        %s266 = smul.addr %s265, 8
        %s267 = scalar_lea.vmem [#allocation8], %s266
        // Predicated region
        $region45: #{tpu_custom_call.1} parent=31 // pred_check
          %p268 = pneg %p107
        $region46: #{tpu_custom_call.1} parent=31 // pred_check_branch
          %270 = sbr.rel (%p268) target = $region48
        $region47: #{tpu_custom_call.1} parent=31 // pred_region
          %272 = vsyncadd %s264, 0
          %s273 = smul.addr %s21, 8
          %s274 = scalar_lea.hbm %s3, %s273
          %s276 = sshll.u32 %s267, 4
          %s277 = int_to_ptr.vmem [resolvable:$true] %s276
          %s278 = sshll.u32 %s274, 4
          %s279 = int_to_ptr.hbm [resolvable:$true] %s278
          %281 = dma.vmem_to_hbm [thread:$0]  %s277, 128, %s279, %s264
        $region48: #{tpu_custom_call.1} parent=31 // pred_fallthru
          _
      $region32: #{tpu_custom_call.1} parent=5 // pred_fallthru
        _
      %p282 = scmp.le.s32.totalorder 2, %s16
      // Predicated region
      $region49: #{tpu_custom_call.1} parent=5 // pred_check
        %p283 = pneg %p282
      $region50: #{tpu_custom_call.1} parent=5 // pred_check_branch
        %285 = sbr.rel (%p283) target = $region52
      $region51: #{tpu_custom_call.1} parent=5 // pred_region
        %s286 = ssub.s32 %s16, 2
        // Predicated region
        $region53: #{tpu_custom_call.1} parent=51 // pred_check
          %p287 = pneg %p113
        $region54: #{tpu_custom_call.1} parent=51 // pred_check_branch
          %289 = sbr.rel (%p287) target = $region56
        $region55: #{tpu_custom_call.1} parent=51 // pred_region
          %s290 = sand.u32 %s98, 1
          %s291 = scalar_lea.sflag [#allocation4], %s290
          %s292 = sand.u32 %s98, 1
          %s293 = smul.addr %s292, 8
          %s294 = scalar_lea.vmem [#allocation8], %s293
          %296 = dma.done %s291, 128
        $region56: #{tpu_custom_call.1} parent=51 // pred_fallthru
          _
      $region52: #{tpu_custom_call.1} parent=5 // pred_fallthru
        _
    $region6: #{tpu_custom_call.1} parent=1 // loop_footer
      %s20 = sadd.s32 1, %s16
    $region7: #{tpu_custom_call.1} parent=1 // loop_footer_branch
      %15 = sbr.rel target = $region3
    $region8: #{tpu_custom_call.1} parent=1 // loop_exit
      _
    %297 = vsyncpa [#allocation3], 1
    %s298 = scalar_lea.sflag [#allocation3], 1
    %299 = vsyncpa %s298, 1
    %300 = vsyncpa [#allocation6], 1
    %301 = vsyncpa [#allocation4], 1
    %s302 = scalar_lea.sflag [#allocation4], 1
    %303 = vsyncpa %s302, 1

</llo_original>
